<compile_context>
chip_gen: v7x
topology: tpu7x:2x2x1
jax: 0.10.0
libtpu: 0.0.40
codegen_flags: <defaults>
</compile_context>

<pallas_src>
import functools

import jax
import jax.numpy as jnp
from jax.experimental import pallas as pl
from jax.experimental.pallas import tpu as pltpu


def _model_loss_kernel(out_ref, p1_ref, y2_ref, y_ref, loss_ref, *,
                       alpha: float, n_total: int, tiles_per_chunk: int):
    p = pl.program_id(0)                      # parallel chunk
    t = pl.program_id(1)                      # row-tile within chunk (reduction)

    out = out_ref[...].astype(jnp.float32)    # (TN, C)
    p1 = p1_ref[...].astype(jnp.float32)      # (TN, C)
    y2 = y2_ref[...].astype(jnp.float32)      # (TN, C2)
    y = y_ref[...]                            # (TN, 1) int32

    tn, _ = out.shape
    _, c2 = y2.shape

    iota_c2 = jax.lax.broadcasted_iota(jnp.int32, (1, c2), 1)

    # ---- term 1: CrossEntropy(out, argmax(p1, -1)) ----
    # Single-reduce gather of out at argmax(p1): ties broken toward the tied
    # column whose `out` value is largest (torch.argmax would pick the first).
    p1_max = jnp.max(p1, axis=-1, keepdims=True)
    sel1 = jnp.max(jnp.where(p1 == p1_max, out, -jnp.inf),
                   axis=-1, keepdims=True)
    m1 = jnp.max(out, axis=-1, keepdims=True)
    lse1 = m1 + jnp.log(jnp.sum(jnp.exp(out - m1), axis=-1, keepdims=True))

    # ---- term 2: CrossEntropy(y2, y) ----
    # Note: out-of-range y contributes sel2 = 0 (PyTorch would raise).
    sel2 = jnp.sum(jnp.where(iota_c2 == y, y2, 0.0), axis=-1, keepdims=True)
    m2 = jnp.max(y2, axis=-1, keepdims=True)
    lse2 = m2 + jnp.log(jnp.sum(jnp.exp(y2 - m2), axis=-1, keepdims=True))

    # Combine per-row contributions, mask padded / duplicated rows, one reduce.
    per_row = (lse1 - sel1) + alpha * (lse2 - sel2)              # (TN, 1)
    tile_idx = p * tiles_per_chunk + t                           # unclamped
    row_ids = jax.lax.broadcasted_iota(jnp.int32, (tn, 1), 0) + tile_idx * tn
    per_row = jnp.where(row_ids < n_total, per_row, 0.0)
    tile_sum = jnp.sum(per_row, axis=0, keepdims=True)           # (1, 1)

    # ---- accumulate raw sums into the resident per-chunk output block ----
    @pl.when(t == 0)
    def _init():
        loss_ref[...] = jnp.zeros_like(loss_ref)

    loss_ref[...] += tile_sum                                    # -> (1,1,128)


def _vmem_limit_bytes():
    """Generation-aware scoped-VMEM limit (~0.7x physical, capped)."""
    phys = 64 * 1024 * 1024          # conservative fallback (v7x physical)
    try:
        phys = int(pltpu.get_tpu_info().vmem_capacity_bytes)
    except Exception:
        pass
    return int(min(phys * 7 // 10, 100 * 1024 * 1024))


def _default_num_chunks():
    """2 parallel chunks only on dual-TensorCore chips; 1 on v5e/v6e."""
    try:
        kind = jax.devices()[0].device_kind.lower()
    except Exception:
        return 1
    if any(tag in kind for tag in ("v4", "v5p", "v7")):
        return 2
    return 1


def _sublane_multiple(itemsize):
    return max(8, 32 // max(int(itemsize), 1))   # 8 f32 / 16 bf16 / 32 int8


def _pick_row_tile(n, c, c2, itemsize, budget):
    """Row tile sized against the real (lane-padded) per-row VMEM footprint."""
    c_pad = -(-c // 128) * 128
    c2_pad = -(-c2 // 128) * 128
    # Double-buffered streamed inputs (lane-padded widths).
    bytes_per_row = 2 * itemsize * (2 * c_pad + c2_pad)
    # Double-buffered (tn, 1) int32 target block pads to 128 lanes per row.
    bytes_per_row += 2 * 128 * 4
    # Live f32 upcasts / exp temporaries.
    bytes_per_row += 6 * 4 * max(c_pad, c2_pad)
    tn = budget // max(bytes_per_row, 1)
    tn = int(min(tn, n, 8192))
    if tn >= n:
        return n
    sub = _sublane_multiple(itemsize)
    return max(sub, (tn // sub) * sub)


def model_loss(out, p1, y2, y, W, alpha=1.0, beta=0.001,
               row_tile=None, num_parallel_chunks=None):
    """Pallas implementation of ModelLoss.forward((out, p1, y2, W), y)."""
    n, c = out.shape
    _, c2 = y2.shape
    y2d = y.reshape(n, 1).astype(jnp.int32)

    vmem_limit = _vmem_limit_bytes()
    if num_parallel_chunks is None:
        num_parallel_chunks = _default_num_chunks()

    if row_tile is None:
        row_tile = _pick_row_tile(n, c, c2, out.dtype.itemsize,
                                  budget=int(0.7 * vmem_limit))
    sub = _sublane_multiple(out.dtype.itemsize)
    tn = int(row_tile)
    if tn >= n:
        tn = n
    elif tn % sub != 0:
        tn = max(sub, (tn // sub) * sub)

    n_tiles = -(-n // tn)
    num_chunks = max(1, min(int(num_parallel_chunks), n_tiles))
    tiles_per_chunk = -(-n_tiles // num_chunks)

    def row_map(p, t):
        # clamp so over-covered tiles re-read the last real block (rows masked)
        return (jnp.minimum(p * tiles_per_chunk + t, n_tiles - 1), 0)

    in_specs = [
        pl.BlockSpec((tn, c), row_map),                 # out
        pl.BlockSpec((tn, c), row_map),                 # p1
        pl.BlockSpec((tn, c2), row_map),                # y2
        pl.BlockSpec((tn, 1), row_map),                 # y
    ]
    out_specs = pl.BlockSpec((1, 1, 128), lambda p, t: (p, 0, 0))

    kernel = functools.partial(
        _model_loss_kernel, alpha=float(alpha),
        n_total=n, tiles_per_chunk=tiles_per_chunk)

    itemsize = out.dtype.itemsize
    bytes_in = (out.size * itemsize + p1.size * p1.dtype.itemsize +
                y2.size * y2.dtype.itemsize + y2d.size * 4)
    cost = pl.CostEstimate(
        flops=int(n * 6 * (c + c2)),
        transcendentals=int(n * (c + c2) + 2 * n),
        bytes_accessed=int(bytes_in + num_chunks * 128 * 4),
    )

    partials = pl.pallas_call(
        kernel,
        out_shape=jax.ShapeDtypeStruct((num_chunks, 1, 128), jnp.float32),
        grid=(num_chunks, tiles_per_chunk),
        in_specs=in_specs,
        out_specs=out_specs,
        compiler_params=pltpu.CompilerParams(
            dimension_semantics=("parallel", "arbitrary"),
            vmem_limit_bytes=vmem_limit),
        cost_estimate=cost,
    )(out, p1, y2, y2d)

    # Raw summed CE terms across chunks, normalized by global N.
    ce_sum = jnp.sum(partials[:, 0, 0])
    # L21 term hoisted out of the kernel: W is touched exactly once, so a
    # plain-JAX reduction is cheaper than streaming it through VMEM.
    w32 = W.astype(jnp.float32)
    l21 = jnp.sum(jnp.sqrt(jnp.sum(w32 * w32, axis=-1)))
    return ce_sum / n + beta * l21


def _reference_loss(out, p1, y2, y, W, alpha=1.0, beta=0.001):
    """Pure-JAX reference mirroring the PyTorch module."""
    def ce(logits, targets):
        lse = jax.nn.logsumexp(logits, axis=-1)
        picked = jnp.take_along_axis(logits, targets[:, None], axis=-1)[:, 0]
        return jnp.mean(lse - picked)

    y1 = jnp.argmax(p1, axis=-1)
    std = ce(out, y1) + alpha * ce(y2, y)
    l21 = jnp.sum(jnp.sqrt(jnp.sum(W ** 2, axis=-1)))
    return std + beta * l21


if __name__ == "__main__":
    key = jax.random.PRNGKey(0)
    k1, k2, k3, k4, k5 = jax.random.split(key, 5)

    N, C, C2 = 36, 16, 16
    R, D = 16, 32

    out = jax.random.normal(k1, (N, C), dtype=jnp.float32)
    p1 = jax.random.normal(k2, (N, C), dtype=jnp.float32)
    y2 = jax.random.normal(k3, (N, C2), dtype=jnp.float32)
    y = jax.random.randint(k4, (N,), 0, C2, dtype=jnp.int32)
    W = jax.random.normal(k5, (R, D), dtype=jnp.float32)

    # row_tile=8, 2 chunks -> grid (2, 3) over 5 real tiles: exercises the
    # resident-accumulator path, the ragged last tile and the clamped
    # (duplicated, fully masked) over-coverage tile.
    loss = model_loss(out, p1, y2, y, W, alpha=1.0, beta=0.001,
                      row_tile=8, num_parallel_chunks=2)
    jax.block_until_ready(loss)

    ref = _reference_loss(out, p1, y2, y, W, alpha=1.0, beta=0.001)
    assert jnp.allclose(loss, ref, rtol=1e-5, atol=1e-5), (loss, ref)

    print("KERNEL_OK")
</pallas_src>

<mosaic_0001>
module attributes {stable_mosaic.version = 11 : i64} {
  func.func @_model_loss_kernel(%arg0: i32, %arg1: i32, %arg2: memref<8x16xf32, #tpu.memory_space<vmem>>, %arg3: memref<8x16xf32, #tpu.memory_space<vmem>>, %arg4: memref<8x16xf32, #tpu.memory_space<vmem>>, %arg5: memref<8x1xi32, #tpu.memory_space<vmem>>, %arg6: memref<1x1x128xf32, #tpu.memory_space<vmem>>) attributes {dimension_semantics = [#tpu.dimension_semantics<parallel>, #tpu.dimension_semantics<arbitrary>], iteration_bounds = array<i64: 2, 3>, scalar_prefetch = 0 : i64, scratch_operands = 0 : i64, tpu.core_type = #tpu.core_type<tc>, window_params = [{transform_indices = @transform_0, window_bounds = array<i64: 8, 16>}, {transform_indices = @transform_1, window_bounds = array<i64: 8, 16>}, {transform_indices = @transform_2, window_bounds = array<i64: 8, 16>}, {transform_indices = @transform_3, window_bounds = array<i64: 8, 1>}, {transform_indices = @transform_4, window_bounds = array<i64: 1, 1, 128>}]} {
    %c0 = arith.constant 0 : index
    %c0_0 = arith.constant 0 : index
    %0 = vector.load %arg2[%c0, %c0_0] : memref<8x16xf32, #tpu.memory_space<vmem>>, vector<8x16xf32>
    %c0_1 = arith.constant 0 : index
    %c0_2 = arith.constant 0 : index
    %1 = vector.load %arg3[%c0_1, %c0_2] : memref<8x16xf32, #tpu.memory_space<vmem>>, vector<8x16xf32>
    %c0_3 = arith.constant 0 : index
    %c0_4 = arith.constant 0 : index
    %2 = vector.load %arg4[%c0_3, %c0_4] : memref<8x16xf32, #tpu.memory_space<vmem>>, vector<8x16xf32>
    %c0_5 = arith.constant 0 : index
    %c0_6 = arith.constant 0 : index
    %3 = vector.load %arg5[%c0_5, %c0_6] : memref<8x1xi32, #tpu.memory_space<vmem>>, vector<8x1xi32>
    %4 = tpu.iota {dimensions = array<i32: 1>} : vector<1x16xi32>
    %cst = arith.constant dense<0xFF800000> : vector<8xf32>
    %5 = vector.multi_reduction <maximumf>, %1, %cst [1] : vector<8x16xf32> to vector<8xf32>
    %6 = vector.shape_cast %5 : vector<8xf32> to vector<8x1xf32>
    %7 = vector.broadcast %6 : vector<8x1xf32> to vector<8x16xf32>
    %8 = arith.cmpf oeq, %1, %7 : vector<8x16xf32>
    %cst_7 = arith.constant 0xFF800000 : f32
    %9 = vector.broadcast %cst_7 : f32 to vector<8x16xf32>
    %10 = arith.select %8, %0, %9 : vector<8x16xi1>, vector<8x16xf32>
    %cst_8 = arith.constant dense<0xFF800000> : vector<8xf32>
    %11 = vector.multi_reduction <maximumf>, %10, %cst_8 [1] : vector<8x16xf32> to vector<8xf32>
    %12 = vector.shape_cast %11 : vector<8xf32> to vector<8x1xf32>
    %cst_9 = arith.constant dense<0xFF800000> : vector<8xf32>
    %13 = vector.multi_reduction <maximumf>, %0, %cst_9 [1] : vector<8x16xf32> to vector<8xf32>
    %14 = vector.shape_cast %13 : vector<8xf32> to vector<8x1xf32>
    %15 = vector.broadcast %14 : vector<8x1xf32> to vector<8x16xf32>
    %16 = arith.subf %0, %15 : vector<8x16xf32>
    %17 = math.exp %16 : vector<8x16xf32>
    %cst_10 = arith.constant dense<0.000000e+00> : vector<8xf32>
    %18 = vector.multi_reduction <add>, %17, %cst_10 [1] : vector<8x16xf32> to vector<8xf32>
    %19 = vector.shape_cast %18 : vector<8xf32> to vector<8x1xf32>
    %20 = math.log %19 : vector<8x1xf32>
    %21 = arith.addf %14, %20 : vector<8x1xf32>
    %22 = vector.broadcast %4 : vector<1x16xi32> to vector<8x16xi32>
    %23 = vector.broadcast %3 : vector<8x1xi32> to vector<8x16xi32>
    %24 = arith.cmpi eq, %22, %23 : vector<8x16xi32>
    %cst_11 = arith.constant 0.000000e+00 : f32
    %25 = vector.broadcast %cst_11 : f32 to vector<8x16xf32>
    %26 = arith.select %24, %2, %25 : vector<8x16xi1>, vector<8x16xf32>
    %cst_12 = arith.constant dense<0.000000e+00> : vector<8xf32>
    %27 = vector.multi_reduction <add>, %26, %cst_12 [1] : vector<8x16xf32> to vector<8xf32>
    %28 = vector.shape_cast %27 : vector<8xf32> to vector<8x1xf32>
    %cst_13 = arith.constant dense<0xFF800000> : vector<8xf32>
    %29 = vector.multi_reduction <maximumf>, %2, %cst_13 [1] : vector<8x16xf32> to vector<8xf32>
    %30 = vector.shape_cast %29 : vector<8xf32> to vector<8x1xf32>
    %31 = vector.broadcast %30 : vector<8x1xf32> to vector<8x16xf32>
    %32 = arith.subf %2, %31 : vector<8x16xf32>
    %33 = math.exp %32 : vector<8x16xf32>
    %cst_14 = arith.constant dense<0.000000e+00> : vector<8xf32>
    %34 = vector.multi_reduction <add>, %33, %cst_14 [1] : vector<8x16xf32> to vector<8xf32>
    %35 = vector.shape_cast %34 : vector<8xf32> to vector<8x1xf32>
    %36 = math.log %35 : vector<8x1xf32>
    %37 = arith.addf %30, %36 : vector<8x1xf32>
    %38 = arith.subf %21, %12 : vector<8x1xf32>
    %39 = arith.subf %37, %28 : vector<8x1xf32>
    %cst_15 = arith.constant 1.000000e+00 : f32
    %40 = vector.broadcast %cst_15 : f32 to vector<8x1xf32>
    %41 = arith.mulf %40, %39 : vector<8x1xf32>
    %42 = arith.addf %38, %41 : vector<8x1xf32>
    %c3_i32 = arith.constant 3 : i32
    %43 = arith.muli %arg0, %c3_i32 : i32
    %44 = arith.addi %43, %arg1 : i32
    %45 = tpu.iota {dimensions = array<i32: 0>} : vector<8x1xi32>
    %c8_i32 = arith.constant 8 : i32
    %46 = arith.muli %44, %c8_i32 : i32
    %47 = vector.broadcast %46 : i32 to vector<8x1xi32>
    %48 = arith.addi %45, %47 : vector<8x1xi32>
    %c36_i32 = arith.constant 36 : i32
    %49 = vector.broadcast %c36_i32 : i32 to vector<8x1xi32>
    %50 = arith.cmpi slt, %48, %49 : vector<8x1xi32>
    %cst_16 = arith.constant 0.000000e+00 : f32
    %51 = vector.broadcast %cst_16 : f32 to vector<8x1xf32>
    %52 = arith.select %50, %42, %51 : vector<8x1xi1>, vector<8x1xf32>
    %cst_17 = arith.constant dense<0.000000e+00> : vector<1xf32>
    %53 = vector.multi_reduction <add>, %52, %cst_17 [0] : vector<8x1xf32> to vector<1xf32>
    %54 = vector.shape_cast %53 : vector<1xf32> to vector<1x1xf32>
    %c0_i32 = arith.constant 0 : i32
    %55 = arith.cmpi eq, %arg1, %c0_i32 : i32
    %56 = arith.extui %55 : i1 to i32
    %c0_i32_18 = arith.constant 0 : i32
    %57 = arith.cmpi ne, %56, %c0_i32_18 : i32
    scf.if %57 {
      %cst_25 = arith.constant 0.000000e+00 : f32
      %63 = vector.broadcast %cst_25 : f32 to vector<1x1x128xf32>
      %c0_26 = arith.constant 0 : index
      %c0_27 = arith.constant 0 : index
      %c0_28 = arith.constant 0 : index
      %64 = vector.load %arg6[%c0_26, %c0_27, %c0_28] : memref<1x1x128xf32, #tpu.memory_space<vmem>>, vector<1x1x128xf32>
      tpu.vector_store %arg6[%c0_26, %c0_27, %c0_28], %63 {strides = array<i32>} : memref<1x1x128xf32, #tpu.memory_space<vmem>>, vector<1x1x128xf32>,
    } else {
    }
    %c0_19 = arith.constant 0 : index
    %c0_20 = arith.constant 0 : index
    %c0_21 = arith.constant 0 : index
    %58 = vector.load %arg6[%c0_19, %c0_20, %c0_21] : memref<1x1x128xf32, #tpu.memory_space<vmem>>, vector<1x1x128xf32>
    %59 = vector.shape_cast %54 : vector<1x1xf32> to vector<1x1x1xf32>
    %60 = vector.broadcast %59 : vector<1x1x1xf32> to vector<1x1x128xf32>
    %61 = arith.addf %58, %60 : vector<1x1x128xf32>
    %c0_22 = arith.constant 0 : index
    %c0_23 = arith.constant 0 : index
    %c0_24 = arith.constant 0 : index
    %62 = vector.load %arg6[%c0_22, %c0_23, %c0_24] : memref<1x1x128xf32, #tpu.memory_space<vmem>>, vector<1x1x128xf32>
    tpu.vector_store %arg6[%c0_22, %c0_23, %c0_24], %61 {strides = array<i32>} : memref<1x1x128xf32, #tpu.memory_space<vmem>>, vector<1x1x128xf32>,
    return
  }
  func.func @transform_0(%arg0: i32, %arg1: i32) -> (i32, i32) {
    %c3_i32 = arith.constant 3 : i32
    %0 = arith.muli %arg0, %c3_i32 : i32
    %1 = arith.addi %0, %arg1 : i32
    %c4_i32 = arith.constant 4 : i32
    %2 = arith.minsi %1, %c4_i32 : i32
    %c0_i32 = arith.constant 0 : i32
    %c0_i32_0 = arith.constant 0 : i32
    return %2, %c0_i32 : i32, i32
  }
  func.func @transform_1(%arg0: i32, %arg1: i32) -> (i32, i32) {
    %c3_i32 = arith.constant 3 : i32
    %0 = arith.muli %arg0, %c3_i32 : i32
    %1 = arith.addi %0, %arg1 : i32
    %c4_i32 = arith.constant 4 : i32
    %2 = arith.minsi %1, %c4_i32 : i32
    %c0_i32 = arith.constant 0 : i32
    %c0_i32_0 = arith.constant 0 : i32
    return %2, %c0_i32 : i32, i32
  }
  func.func @transform_2(%arg0: i32, %arg1: i32) -> (i32, i32) {
    %c3_i32 = arith.constant 3 : i32
    %0 = arith.muli %arg0, %c3_i32 : i32
    %1 = arith.addi %0, %arg1 : i32
    %c4_i32 = arith.constant 4 : i32
    %2 = arith.minsi %1, %c4_i32 : i32
    %c0_i32 = arith.constant 0 : i32
    %c0_i32_0 = arith.constant 0 : i32
    return %2, %c0_i32 : i32, i32
  }
  func.func @transform_3(%arg0: i32, %arg1: i32) -> (i32, i32) {
    %c3_i32 = arith.constant 3 : i32
    %0 = arith.muli %arg0, %c3_i32 : i32
    %1 = arith.addi %0, %arg1 : i32
    %c4_i32 = arith.constant 4 : i32
    %2 = arith.minsi %1, %c4_i32 : i32
    %c0_i32 = arith.constant 0 : i32
    %c0_i32_0 = arith.constant 0 : i32
    return %2, %c0_i32 : i32, i32
  }
  func.func @transform_4(%arg0: i32, %arg1: i32) -> (i32, i32, i32) {
    %c0_i32 = arith.constant 0 : i32
    %c0_i32_0 = arith.constant 0 : i32
    %c0_i32_1 = arith.constant 0 : i32
    return %arg0, %c0_i32, %c0_i32_0 : i32, i32, i32
  }
}

</mosaic_0001>

<llo_original>
// kernel: tpu_custom_call.1
$region0: #{tpu_custom_call.1}
  #allocation0 [shape = 'u32[]', space=smem, size = 0x4, offset = 0x4, fixed_abs, tag = 'smem constant byte address 0x4 - core index']
  #allocation1 [shape = 'u32[144,128]{1,0:T(1,128)}', space=vmem, size = 0x12000, scoped, tag = 'internal scratch']
  %s0 = inlined_call_operand.vmem [shape: f32[36,16], index: 0, kind: input, shape index: {}]
  %s1 = inlined_call_operand.vmem [shape: f32[36,16], index: 1, kind: input, shape index: {}]
  %s2 = inlined_call_operand.vmem [shape: f32[36,16], index: 2, kind: input, shape index: {}]
  %s3 = inlined_call_operand.vmem [shape: s32[36,1], index: 3, kind: input, shape index: {}]
  %s4 = inlined_call_operand.hbm [shape: f32[2,1,128], index: 4, kind: output, shape index: {}]
  %s5 = sld [smem:[#allocation0]]
  $region53: #{tpu_custom_call.1} parent=0
    _
  %s7 = ssub.s32 1, %s5
  %s8 = scalar_select 0, %s7, %s5
  $region1: #{tpu_custom_call.1} parent=0
    #allocation2 [shape = 'u8[1024]{0}', space=vmem, size = 0x400, scoped, tag = 'output window, operand 0']
    #allocation3 [shape = 's32[2]{0}', space=sflag, size = 0x8, scoped, tag = 'scoped memory for tpu_custom_call.1']
    %9 = vsyncpa [#allocation3], 0
    %s10 = scalar_lea.sflag [#allocation3], 1
    %11 = vsyncpa %s10, 0
    loop: start=0, step=1, limit=8
    $region2: #{tpu_custom_call.1} parent=1 // loop_pre_header
      _
    $region3: #{tpu_custom_call.1} parent=1 // loop_header
      %s13 = sphi 0, %s17
      %p14 = scmp.ge.s32.totalorder %s13, 8
      %s20 = sphi 0, %s32
      %s21 = sphi 0, %s28
      %s22 = sphi 0, %s20
      %s23 = sphi 0, %s21
      %s24 = sphi 0, %s22
      %s25 = sphi 0, %s23
      %s43 = sphi 0, %s45
      %s46 = sphi 0, %s43
      %s47 = sphi 0, %s46
      %s63 = sphi 0, %s47
      %s77 = sphi 0, %s79
      %s80 = sphi 0, %s77
      %s81 = sphi 0, %s80
      %s97 = sphi 0, %s81
      %s111 = sphi 0, %s113
      %s114 = sphi 0, %s111
      %s115 = sphi 0, %s114
      %s131 = sphi 0, %s115
      %s145 = sphi 0, %s147
      %s148 = sphi 0, %s145
      %s149 = sphi 0, %s148
      %s165 = sphi 0, %s149
      %s171 = sphi 0, %s173
      %s174 = sphi 0, %s171
      %s175 = sphi 0, %s174
      %s191 = sphi 0, %s175
    $region4: #{tpu_custom_call.1} parent=1 // loop_header_branch
      %16 = sbr.rel (%p14) target = $region8
    $region5: #{tpu_custom_call.1} parent=1 // loop_body
      %s18 = ssub.s32 %s13, 1
      %s19 = ssub.s32 %s13, 2
      %s26 = sadd.s32 1, %s21
      %p27 = scmp.ge.s32.totalorder %s26, 3
      %s28 = scalar_select %p27, 0, %s26
      %s29 = sadd.s32 1, %s20
      %s30 = scalar_select %p27, %s29, %s20
      %p31 = scmp.ge.s32.totalorder %s30, 2
      %s32 = scalar_select %p31, 0, %s30
      %s33 = smul.u32 %s20, 3
      %s34 = sadd.s32 %s33, %s21
      %p35 = scmp.lt.s32.totalorder %s34, 4
      %s36 = scalar_select %p35, %s34, 4
      %s37 = smul.u32 %s32, 3
      %s38 = sadd.s32 %s37, %s28
      %p39 = scmp.lt.s32.totalorder %s38, 4
      %s40 = scalar_select %p39, %s38, 4
      %s41 = ssub.s32 %s36, %s40
      %p42 = scmp.eq.s32.totalorder %s41, 0
      %s44 = sadd.s32 %s43, 1
      %s45 = scalar_select %p42, %s43, %s44
      %p48 = pneg %p42
      %p49 = scmp.eq.s32.totalorder %s13, 5
      %p50 = por %p48, %p49
      %p51 = scmp.ne.s32.totalorder %s43, %s46
      %p52 = scmp.eq.s32.totalorder %s13, 0
      %p53 = por %p51, %p52
      %p54 = scmp.ne.s32.totalorder %s43, %s46
      %p55 = scmp.eq.s32.totalorder %s18, 5
      %p56 = por %p54, %p55
      %p57 = scmp.ne.s32.totalorder %s46, %s47
      %p58 = scmp.eq.s32.totalorder %s18, 0
      %p59 = por %p57, %p58
      %p60 = scmp.ne.s32.totalorder %s46, %s47
      %p61 = scmp.eq.s32.totalorder %s19, 5
      %p62 = por %p60, %p61
      %p64 = scmp.ne.s32.totalorder %s47, %s63
      %p65 = scmp.eq.s32.totalorder %s19, 0
      %p66 = por %p64, %p65
      %s67 = smul.u32 %s20, 3
      %s68 = sadd.s32 %s67, %s21
      %p69 = scmp.lt.s32.totalorder %s68, 4
      %s70 = scalar_select %p69, %s68, 4
      %s71 = smul.u32 %s32, 3
      %s72 = sadd.s32 %s71, %s28
      %p73 = scmp.lt.s32.totalorder %s72, 4
      %s74 = scalar_select %p73, %s72, 4
      %s75 = ssub.s32 %s70, %s74
      %p76 = scmp.eq.s32.totalorder %s75, 0
      %s78 = sadd.s32 %s77, 1
      %s79 = scalar_select %p76, %s77, %s78
      %p82 = pneg %p76
      %p83 = scmp.eq.s32.totalorder %s13, 5
      %p84 = por %p82, %p83
      %p85 = scmp.ne.s32.totalorder %s77, %s80
      %p86 = scmp.eq.s32.totalorder %s13, 0
      %p87 = por %p85, %p86
      %p88 = scmp.ne.s32.totalorder %s77, %s80
      %p89 = scmp.eq.s32.totalorder %s18, 5
      %p90 = por %p88, %p89
      %p91 = scmp.ne.s32.totalorder %s80, %s81
      %p92 = scmp.eq.s32.totalorder %s18, 0
      %p93 = por %p91, %p92
      %p94 = scmp.ne.s32.totalorder %s80, %s81
      %p95 = scmp.eq.s32.totalorder %s19, 5
      %p96 = por %p94, %p95
      %p98 = scmp.ne.s32.totalorder %s81, %s97
      %p99 = scmp.eq.s32.totalorder %s19, 0
      %p100 = por %p98, %p99
      %s101 = smul.u32 %s20, 3
      %s102 = sadd.s32 %s101, %s21
      %p103 = scmp.lt.s32.totalorder %s102, 4
      %s104 = scalar_select %p103, %s102, 4
      %s105 = smul.u32 %s32, 3
      %s106 = sadd.s32 %s105, %s28
      %p107 = scmp.lt.s32.totalorder %s106, 4
      %s108 = scalar_select %p107, %s106, 4
      %s109 = ssub.s32 %s104, %s108
      %p110 = scmp.eq.s32.totalorder %s109, 0
      %s112 = sadd.s32 %s111, 1
      %s113 = scalar_select %p110, %s111, %s112
      %p116 = pneg %p110
      %p117 = scmp.eq.s32.totalorder %s13, 5
      %p118 = por %p116, %p117
      %p119 = scmp.ne.s32.totalorder %s111, %s114
      %p120 = scmp.eq.s32.totalorder %s13, 0
      %p121 = por %p119, %p120
      %p122 = scmp.ne.s32.totalorder %s111, %s114
      %p123 = scmp.eq.s32.totalorder %s18, 5
      %p124 = por %p122, %p123
      %p125 = scmp.ne.s32.totalorder %s114, %s115
      %p126 = scmp.eq.s32.totalorder %s18, 0
      %p127 = por %p125, %p126
      %p128 = scmp.ne.s32.totalorder %s114, %s115
      %p129 = scmp.eq.s32.totalorder %s19, 5
      %p130 = por %p128, %p129
      %p132 = scmp.ne.s32.totalorder %s115, %s131
      %p133 = scmp.eq.s32.totalorder %s19, 0
      %p134 = por %p132, %p133
      %s135 = smul.u32 %s20, 3
      %s136 = sadd.s32 %s135, %s21
      %p137 = scmp.lt.s32.totalorder %s136, 4
      %s138 = scalar_select %p137, %s136, 4
      %s139 = smul.u32 %s32, 3
      %s140 = sadd.s32 %s139, %s28
      %p141 = scmp.lt.s32.totalorder %s140, 4
      %s142 = scalar_select %p141, %s140, 4
      %s143 = ssub.s32 %s138, %s142
      %p144 = scmp.eq.s32.totalorder %s143, 0
      %s146 = sadd.s32 %s145, 1
      %s147 = scalar_select %p144, %s145, %s146
      %p150 = pneg %p144
      %p151 = scmp.eq.s32.totalorder %s13, 5
      %p152 = por %p150, %p151
      %p153 = scmp.ne.s32.totalorder %s145, %s148
      %p154 = scmp.eq.s32.totalorder %s13, 0
      %p155 = por %p153, %p154
      %p156 = scmp.ne.s32.totalorder %s145, %s148
      %p157 = scmp.eq.s32.totalorder %s18, 5
      %p158 = por %p156, %p157
      %p159 = scmp.ne.s32.totalorder %s148, %s149
      %p160 = scmp.eq.s32.totalorder %s18, 0
      %p161 = por %p159, %p160
      %p162 = scmp.ne.s32.totalorder %s148, %s149
      %p163 = scmp.eq.s32.totalorder %s19, 5
      %p164 = por %p162, %p163
      %p166 = scmp.ne.s32.totalorder %s149, %s165
      %p167 = scmp.eq.s32.totalorder %s19, 0
      %p168 = por %p166, %p167
      %s169 = ssub.s32 %s20, %s32
      %p170 = scmp.eq.s32.totalorder %s169, 0
      %s172 = sadd.s32 %s171, 1
      %s173 = scalar_select %p170, %s171, %s172
      %p176 = pneg %p170
      %p177 = scmp.eq.s32.totalorder %s13, 5
      %p178 = por %p176, %p177
      %p179 = scmp.ne.s32.totalorder %s171, %s174
      %p180 = scmp.eq.s32.totalorder %s13, 0
      %p181 = por %p179, %p180
      %p182 = scmp.ne.s32.totalorder %s171, %s174
      %p183 = scmp.eq.s32.totalorder %s18, 5
      %p184 = por %p182, %p183
      %p185 = scmp.ne.s32.totalorder %s174, %s175
      %p186 = scmp.eq.s32.totalorder %s18, 0
      %p187 = por %p185, %p186
      %p188 = scmp.ne.s32.totalorder %s174, %s175
      %p189 = scmp.eq.s32.totalorder %s19, 5
      %p190 = por %p188, %p189
      %p192 = scmp.ne.s32.totalorder %s175, %s191
      %p193 = scmp.eq.s32.totalorder %s19, 0
      %p194 = por %p192, %p193
      %p195 = scmp.le.s32.totalorder 1, %s13
      %p196 = scmp.lt.s32.totalorder %s13, 7
      %p197 = pnand %p195, %p196
      %p198 = pneg %p197
      // Predicated region
      $region9: #{tpu_custom_call.1} parent=5 // pred_check
        _
      $region10: #{tpu_custom_call.1} parent=5 // pred_check_branch
        %200 = sbr.rel (%p197) target = $region12
      $region11: #{tpu_custom_call.1} parent=5 // pred_region
        %s201 = ssub.s32 %s13, 1
      $region12: #{tpu_custom_call.1} parent=5 // pred_fallthru
        _
      %p202 = scmp.lt.s32.totalorder %s13, 6
      // Predicated region
      $region13: #{tpu_custom_call.1} parent=5 // pred_check
        %p203 = pneg %p202
      $region14: #{tpu_custom_call.1} parent=5 // pred_check_branch
        %205 = sbr.rel (%p203) target = $region16
      $region15: #{tpu_custom_call.1} parent=5 // pred_region
        // Predicated region
        $region17: #{tpu_custom_call.1} parent=15 // pred_check
          %p206 = pneg %p53
        $region18: #{tpu_custom_call.1} parent=15 // pred_check_branch
          %208 = sbr.rel (%p206) target = $region20
        $region19: #{tpu_custom_call.1} parent=15 // pred_region
          %s209 = smul.u32 %s20, 3
          %s210 = sadd.s32 %s209, %s21
          %p211 = scmp.lt.s32.totalorder %s210, 4
          %s212 = scalar_select %p211, %s210, 4
          %p213 = scmp.lt.s32.totalorder %s212, 4
          %s214 = scalar_select %p213, %s212, 4
          %s215 = smul.addr %s214, 8
          %s216 = scalar_lea.vmem %s0, %s215
          %s217 = smul.u32 %s20, 3
          %s218 = sadd.s32 %s217, %s21
          %p219 = scmp.lt.s32.totalorder %s218, 4
          %s220 = scalar_select %p219, %s218, 4
        $region20: #{tpu_custom_call.1} parent=15 // pred_fallthru
          _
        // Predicated region
        $region21: #{tpu_custom_call.1} parent=15 // pred_check
          %p221 = pneg %p87
        $region22: #{tpu_custom_call.1} parent=15 // pred_check_branch
          %223 = sbr.rel (%p221) target = $region24
        $region23: #{tpu_custom_call.1} parent=15 // pred_region
          %s224 = smul.u32 %s20, 3
          %s225 = sadd.s32 %s224, %s21
          %p226 = scmp.lt.s32.totalorder %s225, 4
          %s227 = scalar_select %p226, %s225, 4
          %p228 = scmp.lt.s32.totalorder %s227, 4
          %s229 = scalar_select %p228, %s227, 4
          %s230 = smul.addr %s229, 8
          %s231 = scalar_lea.vmem %s1, %s230
          %s232 = smul.u32 %s20, 3
          %s233 = sadd.s32 %s232, %s21
          %p234 = scmp.lt.s32.totalorder %s233, 4
          %s235 = scalar_select %p234, %s233, 4
        $region24: #{tpu_custom_call.1} parent=15 // pred_fallthru
          _
        // Predicated region
        $region25: #{tpu_custom_call.1} parent=15 // pred_check
          %p236 = pneg %p121
        $region26: #{tpu_custom_call.1} parent=15 // pred_check_branch
          %238 = sbr.rel (%p236) target = $region28
        $region27: #{tpu_custom_call.1} parent=15 // pred_region
          %s239 = smul.u32 %s20, 3
          %s240 = sadd.s32 %s239, %s21
          %p241 = scmp.lt.s32.totalorder %s240, 4
          %s242 = scalar_select %p241, %s240, 4
          %p243 = scmp.lt.s32.totalorder %s242, 4
          %s244 = scalar_select %p243, %s242, 4
          %s245 = smul.addr %s244, 8
          %s246 = scalar_lea.vmem %s2, %s245
          %s247 = smul.u32 %s20, 3
          %s248 = sadd.s32 %s247, %s21
          %p249 = scmp.lt.s32.totalorder %s248, 4
          %s250 = scalar_select %p249, %s248, 4
        $region28: #{tpu_custom_call.1} parent=15 // pred_fallthru
          _
        // Predicated region
        $region29: #{tpu_custom_call.1} parent=15 // pred_check
          %p251 = pneg %p155
        $region30: #{tpu_custom_call.1} parent=15 // pred_check_branch
          %253 = sbr.rel (%p251) target = $region32
        $region31: #{tpu_custom_call.1} parent=15 // pred_region
          %s254 = smul.u32 %s20, 3
          %s255 = sadd.s32 %s254, %s21
          %p256 = scmp.lt.s32.totalorder %s255, 4
          %s257 = scalar_select %p256, %s255, 4
          %p258 = scmp.lt.s32.totalorder %s257, 4
          %s259 = scalar_select %p258, %s257, 4
          %s260 = smul.addr %s259, 8
          %s261 = scalar_lea.vmem %s3, %s260
          %s262 = smul.u32 %s20, 3
          %s263 = sadd.s32 %s262, %s21
          %p264 = scmp.lt.s32.totalorder %s263, 4
          %s265 = scalar_select %p264, %s263, 4
        $region32: #{tpu_custom_call.1} parent=15 // pred_fallthru
          _
      $region16: #{tpu_custom_call.1} parent=5 // pred_fallthru
        _
      %p266 = scmp.le.s32.totalorder 1, %s13
      %p267 = scmp.lt.s32.totalorder %s13, 7
      %p268 = pnand %p266, %p267
      %p269 = pneg %p268
      // Predicated region
      $region33: #{tpu_custom_call.1} parent=5 // pred_check
        _
      $region34: #{tpu_custom_call.1} parent=5 // pred_check_branch
        %271 = sbr.rel (%p268) target = $region36
      $region35: #{tpu_custom_call.1} parent=5 // pred_region
        %s272 = ssub.s32 %s13, 1
        %s273 = smul.u32 %s22, 3
        %s274 = sadd.s32 %s273, %s23
        %p275 = scmp.lt.s32.totalorder %s274, 4
        %s276 = scalar_select %p275, %s274, 4
        %p277 = scmp.lt.s32.totalorder %s276, 4
        %s278 = scalar_select %p277, %s276, 4
        %s279 = smul.addr %s278, 8
        %s280 = scalar_lea.vmem %s0, %s279
        %p281 = pneg %p59
        %p282 = pneg %p56
        %s283 = smul.u32 %s22, 3
        %s284 = sadd.s32 %s283, %s23
        %p285 = scmp.lt.s32.totalorder %s284, 4
        %s286 = scalar_select %p285, %s284, 4
        %p287 = scmp.lt.s32.totalorder %s286, 4
        %s288 = scalar_select %p287, %s286, 4
        %s289 = smul.addr %s288, 8
        %s290 = scalar_lea.vmem %s1, %s289
        %p291 = pneg %p93
        %p292 = pneg %p90
        %s293 = smul.u32 %s22, 3
        %s294 = sadd.s32 %s293, %s23
        %p295 = scmp.lt.s32.totalorder %s294, 4
        %s296 = scalar_select %p295, %s294, 4
        %p297 = scmp.lt.s32.totalorder %s296, 4
        %s298 = scalar_select %p297, %s296, 4
        %s299 = smul.addr %s298, 8
        %s300 = scalar_lea.vmem %s2, %s299
        %p301 = pneg %p127
        %p302 = pneg %p124
        %s303 = smul.u32 %s22, 3
        %s304 = sadd.s32 %s303, %s23
        %p305 = scmp.lt.s32.totalorder %s304, 4
        %s306 = scalar_select %p305, %s304, 4
        %p307 = scmp.lt.s32.totalorder %s306, 4
        %s308 = scalar_select %p307, %s306, 4
        %s309 = smul.addr %s308, 8
        %s310 = scalar_lea.vmem %s3, %s309
        %p311 = pneg %p161
        %p312 = pneg %p158
        %p313 = pneg %p187
        %p314 = pneg %p184
        %s315 = sand.u32 %s174, 1
        %s316 = scalar_lea.sflag [#allocation3], %s315
        %s317 = sand.u32 %s174, 1
        %s318 = scalar_lea.vmem [#allocation2], %s317
        %s319 = smul.u32 %s22, 3
        %s320 = sadd.s32 %s319, %s23
        %p321 = scmp.lt.s32.totalorder %s320, 4
        %s322 = scalar_select %p321, %s320, 4
        %p323 = scmp.lt.s32.totalorder %s322, 4
        %s324 = scalar_select %p323, %s322, 4
        %s325 = smul.addr %s324, 8
        %s326 = scalar_lea.vmem %s0, %s325
        %s327 = smul.u32 %s22, 3
        %s328 = sadd.s32 %s327, %s23
        %p329 = scmp.lt.s32.totalorder %s328, 4
        %s330 = scalar_select %p329, %s328, 4
        %s331 = smul.u32 %s22, 3
        %s332 = sadd.s32 %s331, %s23
        %p333 = scmp.lt.s32.totalorder %s332, 4
        %s334 = scalar_select %p333, %s332, 4
        %p335 = scmp.lt.s32.totalorder %s334, 4
        %s336 = scalar_select %p335, %s334, 4
        %s337 = smul.addr %s336, 8
        %s338 = scalar_lea.vmem %s1, %s337
        %s339 = smul.u32 %s22, 3
        %s340 = sadd.s32 %s339, %s23
        %p341 = scmp.lt.s32.totalorder %s340, 4
        %s342 = scalar_select %p341, %s340, 4
        %s343 = smul.u32 %s22, 3
        %s344 = sadd.s32 %s343, %s23
        %p345 = scmp.lt.s32.totalorder %s344, 4
        %s346 = scalar_select %p345, %s344, 4
        %p347 = scmp.lt.s32.totalorder %s346, 4
        %s348 = scalar_select %p347, %s346, 4
        %s349 = smul.addr %s348, 8
        %s350 = scalar_lea.vmem %s2, %s349
        %s351 = smul.u32 %s22, 3
        %s352 = sadd.s32 %s351, %s23
        %p353 = scmp.lt.s32.totalorder %s352, 4
        %s354 = scalar_select %p353, %s352, 4
        %s355 = smul.u32 %s22, 3
        %s356 = sadd.s32 %s355, %s23
        %p357 = scmp.lt.s32.totalorder %s356, 4
        %s358 = scalar_select %p357, %s356, 4
        %p359 = scmp.lt.s32.totalorder %s358, 4
        %s360 = scalar_select %p359, %s358, 4
        %s361 = smul.addr %s360, 8
        %s362 = scalar_lea.vmem %s3, %s361
        %s363 = smul.u32 %s22, 3
        %s364 = sadd.s32 %s363, %s23
        %p365 = scmp.lt.s32.totalorder %s364, 4
        %s366 = scalar_select %p365, %s364, 4
        %v367 = vld [vmem:[%s326] sm:$0xff]
        %v368 = vld [vmem:[%s338] sm:$0xff]
        %v369 = vld [vmem:[%s350] sm:$0xff]
        %v370 = vld [vmem:[%s362] sm:$0xff]
        %v371 = vlaneseq
        %v372 = vand.u32 %v371, 127
        %vm373 = vcmask 130048
        %v374 = vsel %vm373, %v368, -inf
        %375 = vmax.xlane.f32.xlu0 %v374
        %v376 = vpop.xlane.xlu0 %375
        %vm377 = vcmp.eq.f32.partialorder %v368, %v376
        %v378 = vsel %vm377, %v367, -inf
        %v379 = vsel %vm373, %v378, -inf
        %380 = vmax.xlane.f32.xlu0 %v379
        %v381 = vpop.xlane.xlu0 %380
        %v382 = vsel %vm373, %v367, -inf
        %383 = vmax.xlane.f32.xlu0 %v382
        %v384 = vpop.xlane.xlu0 %383
        %v385 = vsub.f32 %v367, %v384
        %v386 = vmul.f32 %v385, 1.442695
        %v387 = vpow.pop %v386
        %v388 = vsel %vm373, %v387, 0.0
        %389 = vadd.xlane.f32.xlu0 %v388
        %v390 = vpop.xlane.xlu0 %389
        %v391 = vlog2.pop %v390
        %v392 = vmul.f32 %v391, 0.6931472
        %v393 = vadd.f32 %v384, %v392
        %394 = vset.pattern.permute.xlu0 0
        %395 = vperm.xlu0 %394, %v370
        %v396 = vpop.permute.xlu0 %395
        %vm397 = vcmp.eq.s32.totalorder %v372, %v396
        %v398 = vsel %vm397, %v369, 0.0
        %v399 = vsel %vm373, %v398, 0.0
        %400 = vadd.xlane.f32.xlu0 %v399
        %v401 = vpop.xlane.xlu0 %400
        %v402 = vsel %vm373, %v369, -inf
        %403 = vmax.xlane.f32.xlu0 %v402
        %v404 = vpop.xlane.xlu0 %403
        %v405 = vsub.f32 %v369, %v404
        %v406 = vmul.f32 %v405, 1.442695
        %v407 = vpow.pop %v406
        %v408 = vsel %vm373, %v407, 0.0
        %409 = vadd.xlane.f32.xlu0 %v408
        %v410 = vpop.xlane.xlu0 %409
        %v411 = vlog2.pop %v410
        %v412 = vmul.f32 %v411, 0.6931472
        %v413 = vadd.f32 %v404, %v412
        %v414 = vsub.f32 %v393, %v381
        %v415 = vsub.f32 %v413, %v401
        %v416 = vadd.f32 %v414, %v415
        %s417 = smul.u32 %s22, 3
        %s418 = sadd.s32 %s417, %s23
        %v419 = vlaneseq
        %v420 = vshrl.u32 %v419, 7
        %s421 = smul.u32 %s418, 8
        %v422 = vstv %s421
        %v423 = vadd.s32 %v420, %v422
        %vm424 = vcmp.lt.s32.totalorder %v423, 36
        %v425 = vsel %vm424, %v416, 0.0
        %v426 = vrot.slane %v425, 4
        %v427 = vadd.f32 %v425, %v426
        %v428 = vrot.slane %v427, 2
        %v429 = vadd.f32 %v427, %v428
        %v430 = vrot.slane %v429, 1
        %v431 = vadd.f32 %v429, %v430
        %p432 = scmp.eq.s32.totalorder %s23, 0
        // Predicated region
        $region37: #{tpu_custom_call.1} parent=35 // pred_check
          %p433 = pneg %p432
        $region38: #{tpu_custom_call.1} parent=35 // pred_check_branch
          %435 = sbr.rel (%p433) target = $region40
        $region39: #{tpu_custom_call.1} parent=35 // pred_region
          %436 = vst [vmem:[%s318] sm:$0x1] 0.0
        $region40: #{tpu_custom_call.1} parent=35 // pred_fallthru
          _
        %v437 = vld [vmem:[%s318] sm:$0x1]
        %v438 = vadd.f32 %v437, %v431
        %439 = vst [vmem:[%s318] sm:$0x1] %v438
        %s440 = sand.u32 %s174, 1
        %s441 = scalar_lea.sflag [#allocation3], %s440
        %s442 = sand.u32 %s174, 1
        %s443 = scalar_lea.vmem [#allocation2], %s442
        // Predicated region
        $region41: #{tpu_custom_call.1} parent=35 // pred_check
          %p444 = pneg %p184
        $region42: #{tpu_custom_call.1} parent=35 // pred_check_branch
          %446 = sbr.rel (%p444) target = $region44
        $region43: #{tpu_custom_call.1} parent=35 // pred_region
          %s448 = ssub.s32 16, 16
          %449 = vsyncadd %s441, %s448
          %s450 = smul.addr %s22, 16
          %s451 = scalar_lea.hbm %s4, %s450
          %s453 = sshll.u32 %s443, 4
          %s454 = int_to_ptr.vmem [resolvable:$true] %s453
          %456 = dma.vmem_to_hbm [thread:$0]  %s454, 16, %s451, %s441
        $region44: #{tpu_custom_call.1} parent=35 // pred_fallthru
          _
      $region36: #{tpu_custom_call.1} parent=5 // pred_fallthru
        _
      %p457 = scmp.le.s32.totalorder 2, %s13
      // Predicated region
      $region45: #{tpu_custom_call.1} parent=5 // pred_check
        %p458 = pneg %p457
      $region46: #{tpu_custom_call.1} parent=5 // pred_check_branch
        %460 = sbr.rel (%p458) target = $region48
      $region47: #{tpu_custom_call.1} parent=5 // pred_region
        %s461 = ssub.s32 %s13, 2
        // Predicated region
        $region49: #{tpu_custom_call.1} parent=47 // pred_check
          %p462 = pneg %p190
        $region50: #{tpu_custom_call.1} parent=47 // pred_check_branch
          %464 = sbr.rel (%p462) target = $region52
        $region51: #{tpu_custom_call.1} parent=47 // pred_region
          %s465 = sand.u32 %s175, 1
          %s466 = scalar_lea.sflag [#allocation3], %s465
          %s467 = sand.u32 %s175, 1
          %s468 = scalar_lea.vmem [#allocation2], %s467
          %469 = dma.done %s466, 16
        $region52: #{tpu_custom_call.1} parent=47 // pred_fallthru
          _
      $region48: #{tpu_custom_call.1} parent=5 // pred_fallthru
        _
    $region6: #{tpu_custom_call.1} parent=1 // loop_footer
      %s17 = sadd.s32 1, %s13
    $region7: #{tpu_custom_call.1} parent=1 // loop_footer_branch
      %12 = sbr.rel target = $region3
    $region8: #{tpu_custom_call.1} parent=1 // loop_exit
      _
    %470 = vsyncpa [#allocation3], 1
    %s471 = scalar_lea.sflag [#allocation3], 1
    %472 = vsyncpa %s471, 1

</llo_original>
